<compile_context>
chip_gen: v7x
topology: tpu7x:2x2x1
jax: 0.10.0
libtpu: 0.0.40
codegen_flags: <defaults>
</compile_context>

<pallas_src>
import math

import jax
import jax.numpy as jnp
from jax import lax
from jax.experimental import pallas as pl
from jax.experimental.pallas import tpu as pltpu  # noqa: F401  (kept for TPU backend)

_C = 9                      # stencil components per pattern
_N_IN = 5                   # logit_gate, m_raw, phi_int, phi_f, phi_t
_N_OUT = 6                  # p_re, p_im, df, dt, g_soft, g_hard
_OFF_SCALE = 5.0 / (2.0 * math.pi)


def _pattern_bank_kernel(x_ref, out_ref):
    # Single packed input: (K, 45) = [logit_gate | m_raw | phi_int | phi_f | phi_t]
    x = x_ref[...]
    logit_gate = x[:, 0 * _C:1 * _C]
    m_raw      = x[:, 1 * _C:2 * _C]
    phi_int    = x[:, 2 * _C:3 * _C]
    phi_f      = x[:, 3 * _C:4 * _C]
    phi_t      = x[:, 4 * _C:5 * _C]

    # Soft / hard gates (hard gate is forward-only thresholding, matching the
    # reference forward pass).
    g_soft = jax.nn.sigmoid(logit_gate)
    g_hard = (g_soft > 0.5).astype(jnp.float32)

    # Magnitudes: softplus(m_raw) * g_soft, then L2-normalize over the 9
    # components.  clamp_min(1e-8) is applied to the squared sum before the
    # (r)sqrt, exactly like the PyTorch module.
    m = jax.nn.softplus(m_raw) * g_soft
    sq = jnp.maximum(jnp.sum(m * m, axis=-1, keepdims=True), 1e-8)
    m = m * lax.rsqrt(sq)                      # EUP rsqrt, no VPU divide

    # Complex values P = m * e^{j*phi_int} split into re/im (no complex dtype
    # inside Pallas kernels).
    p_re = m * jnp.cos(phi_int)
    p_im = m * jnp.sin(phi_int)

    # Continuous offsets.
    df = _OFF_SCALE * phi_f
    dt = _OFF_SCALE * phi_t

    # Single packed output: (K, 54) = [p_re | p_im | df | dt | g_soft | g_hard]
    out_ref[...] = jnp.concatenate([p_re, p_im, df, dt, g_soft, g_hard],
                                   axis=-1)


def pattern_bank_forward(logit_gate, m_raw, phi_int, phi_f, phi_t):
    K, C = logit_gate.shape                    # C == 9
    assert C == _C

    # Layout plumbing (wrapper side): one contiguous input slab -> one DMA in.
    packed_in = jnp.concatenate(
        [logit_gate, m_raw, phi_int, phi_f, phi_t], axis=-1
    ).astype(jnp.float32)                      # (K, 45)

    out = pl.pallas_call(
        _pattern_bank_kernel,
        out_shape=jax.ShapeDtypeStruct((K, _N_OUT * C), jnp.float32),
        grid=(),                               # nothing to pipeline; no grid
        in_specs=[pl.BlockSpec((K, _N_IN * C), lambda: (0, 0))],
        out_specs=pl.BlockSpec((K, _N_OUT * C), lambda: (0, 0)),
    )(packed_in)

    # Split the packed output back into the module's return values.
    p_re   = out[:, 0 * C:1 * C]
    p_im   = out[:, 1 * C:2 * C]
    df     = out[:, 2 * C:3 * C]
    dt     = out[:, 3 * C:4 * C]
    g_soft = out[:, 4 * C:5 * C]
    g_hard = out[:, 5 * C:6 * C]
    P = lax.complex(p_re, p_im)
    return P, df, dt, g_soft, g_hard


if __name__ == "__main__":
    K = 16  # small number of patterns
    key = jax.random.PRNGKey(0)
    k1, k2, k3, k4, k5 = jax.random.split(key, 5)

    # Deterministic parameter init mirroring the module's __init__ shapes.
    logit_gate = jax.random.normal(k1, (K, 9), dtype=jnp.float32)
    m_raw = 0.01 * jax.random.normal(k2, (K, 9), dtype=jnp.float32)
    phi_int = jax.random.normal(k3, (K, 9), dtype=jnp.float32)
    phi_f = jax.random.normal(k4, (K, 9), dtype=jnp.float32)
    phi_t = jax.random.normal(k5, (K, 9), dtype=jnp.float32)

    P, df, dt, g_soft, g_hard = pattern_bank_forward(
        logit_gate, m_raw, phi_int, phi_f, phi_t)
    jax.block_until_ready((P, df, dt, g_soft, g_hard))

    # Lightweight sanity checks against a pure-JAX reference.
    g_soft_ref = jax.nn.sigmoid(logit_gate)
    g_hard_ref = (g_soft_ref > 0.5).astype(jnp.float32)
    m_ref = jax.nn.softplus(m_raw) * g_soft_ref
    m_ref = m_ref / jnp.sqrt(
        jnp.maximum(jnp.sum(m_ref ** 2, axis=-1, keepdims=True), 1e-8))
    P_ref = m_ref * jnp.exp(1j * phi_int.astype(jnp.complex64))

    assert jnp.allclose(P, P_ref, atol=1e-5)
    assert jnp.allclose(g_soft, g_soft_ref, atol=1e-6)
    assert jnp.allclose(g_hard, g_hard_ref)
    assert jnp.allclose(df, 5.0 / (2 * math.pi) * phi_f, atol=1e-6)
    assert jnp.allclose(dt, 5.0 / (2 * math.pi) * phi_t, atol=1e-6)
    assert jnp.all((g_hard == 0.0) | (g_hard == 1.0))

    print("KERNEL_OK")
</pallas_src>

<mosaic_0001>
module attributes {stable_mosaic.version = 11 : i64} {
  func.func @_pattern_bank_kernel(%arg0: memref<16x45xf32, #tpu.memory_space<vmem>>, %arg1: memref<16x54xf32, #tpu.memory_space<vmem>>) attributes {dimension_semantics = [], scalar_prefetch = 0 : i64, scratch_operands = 0 : i64, tpu.core_type = #tpu.core_type<tc>} {
    %c0 = arith.constant 0 : index
    %c0_0 = arith.constant 0 : index
    %0 = vector.load %arg0[%c0, %c0_0] : memref<16x45xf32, #tpu.memory_space<vmem>>, vector<16x45xf32>
    %1 = vector.extract_strided_slice %0 {offsets = [0, 0], sizes = [16, 9], strides = [1, 1]} : vector<16x45xf32> to vector<16x9xf32>
    %2 = vector.extract_strided_slice %0 {offsets = [0, 9], sizes = [16, 9], strides = [1, 1]} : vector<16x45xf32> to vector<16x9xf32>
    %3 = vector.extract_strided_slice %0 {offsets = [0, 18], sizes = [16, 9], strides = [1, 1]} : vector<16x45xf32> to vector<16x9xf32>
    %4 = vector.extract_strided_slice %0 {offsets = [0, 27], sizes = [16, 9], strides = [1, 1]} : vector<16x45xf32> to vector<16x9xf32>
    %5 = vector.extract_strided_slice %0 {offsets = [0, 36], sizes = [16, 9], strides = [1, 1]} : vector<16x45xf32> to vector<16x9xf32>
    %6 = arith.negf %1 : vector<16x9xf32>
    %7 = math.exp %6 : vector<16x9xf32>
    %cst = arith.constant 1.000000e+00 : f32
    %8 = vector.broadcast %cst : f32 to vector<16x9xf32>
    %9 = arith.addf %8, %7 : vector<16x9xf32>
    %10 = arith.divf %8, %9 : vector<16x9xf32>
    %cst_1 = arith.constant 5.000000e-01 : f32
    %11 = vector.broadcast %cst_1 : f32 to vector<16x9xf32>
    %12 = arith.cmpf ogt, %10, %11 : vector<16x9xf32>
    %13 = arith.extui %12 : vector<16x9xi1> to vector<16x9xi32>
    %14 = arith.sitofp %13 : vector<16x9xi32> to vector<16x9xf32>
    %cst_2 = arith.constant 0.000000e+00 : f32
    %15 = vector.broadcast %cst_2 : f32 to vector<16x9xf32>
    %16 = arith.maximumf %2, %15 : vector<16x9xf32>
    %17 = vector.broadcast %cst_2 : f32 to vector<16x9xf32>
    %18 = arith.subf %2, %17 : vector<16x9xf32>
    %19 = arith.cmpf one, %18, %18 : vector<16x9xf32>
    %20 = vector.broadcast %cst_2 : f32 to vector<16x9xf32>
    %21 = arith.addf %2, %20 : vector<16x9xf32>
    %22 = math.absf %18 : vector<16x9xf32>
    %cst_3 = arith.constant 0.000000e+00 : f32
    %23 = vector.broadcast %cst_3 : f32 to vector<16x9xf32>
    %24 = arith.subf %23, %22 : vector<16x9xf32>
    %25 = math.exp %24 : vector<16x9xf32>
    %26 = math.log1p %25 : vector<16x9xf32>
    %27 = arith.addf %16, %26 : vector<16x9xf32>
    %28 = arith.select %19, %21, %27 : vector<16x9xi1>, vector<16x9xf32>
    %29 = arith.mulf %28, %10 : vector<16x9xf32>
    %30 = arith.mulf %29, %29 : vector<16x9xf32>
    %cst_4 = arith.constant dense<0.000000e+00> : vector<16xf32>
    %31 = vector.multi_reduction <add>, %30, %cst_4 [1] : vector<16x9xf32> to vector<16xf32>
    %32 = vector.shape_cast %31 : vector<16xf32> to vector<16x1xf32>
    %cst_5 = arith.constant 9.99999993E-9 : f32
    %33 = vector.broadcast %cst_5 : f32 to vector<16x1xf32>
    %34 = arith.maximumf %32, %33 : vector<16x1xf32>
    %35 = math.rsqrt %34 : vector<16x1xf32>
    %36 = vector.broadcast %35 : vector<16x1xf32> to vector<16x9xf32>
    %37 = arith.mulf %29, %36 : vector<16x9xf32>
    %38 = math.cos %3 : vector<16x9xf32>
    %39 = arith.mulf %37, %38 : vector<16x9xf32>
    %40 = math.sin %3 : vector<16x9xf32>
    %41 = arith.mulf %37, %40 : vector<16x9xf32>
    %cst_6 = arith.constant 0.795774698 : f32
    %42 = vector.broadcast %cst_6 : f32 to vector<16x9xf32>
    %43 = arith.mulf %42, %4 : vector<16x9xf32>
    %cst_7 = arith.constant 0.795774698 : f32
    %44 = vector.broadcast %cst_7 : f32 to vector<16x9xf32>
    %45 = arith.mulf %44, %5 : vector<16x9xf32>
    %46 = tpu.concatenate %39, %41, %43, %45, %10, %14 in 1 : vector<16x9xf32>, vector<16x9xf32>, vector<16x9xf32>, vector<16x9xf32>, vector<16x9xf32>, vector<16x9xf32> -> vector<16x54xf32>
    %c0_8 = arith.constant 0 : index
    %c0_9 = arith.constant 0 : index
    %47 = vector.load %arg1[%c0_8, %c0_9] : memref<16x54xf32, #tpu.memory_space<vmem>>, vector<16x54xf32>
    tpu.vector_store %arg1[%c0_8, %c0_9], %46 {strides = array<i32>} : memref<16x54xf32, #tpu.memory_space<vmem>>, vector<16x54xf32>,
    return
  }
}

</mosaic_0001>

<llo_original>
// kernel: tpu_custom_call.1
$region0: #{tpu_custom_call.1}
  #allocation0 [shape = 'u32[]', space=smem, size = 0x4, offset = 0x4, fixed_abs, tag = 'smem constant byte address 0x4 - core index']
  #allocation1 [shape = 'u32[144,128]{1,0:T(1,128)}', space=vmem, size = 0x12000, scoped, tag = 'internal scratch']
  %s0 = inlined_call_operand.hbm [shape: f32[16,45], index: 0, kind: input, shape index: {}]
  %s1 = inlined_call_operand.hbm [shape: f32[16,54], index: 1, kind: output, shape index: {}]
  %s2 = sld [smem:[#allocation0]]
  $region18: #{tpu_custom_call.1} parent=0
    _
  %s4 = ssub.s32 1, %s2
  %s5 = scalar_select 0, %s4, %s2
  $region1: #{tpu_custom_call.1} parent=0
    #allocation2 [shape = 'u8[8192]{0}', space=vmem, size = 0x2000, scoped, tag = 'input window, operand 0, single buffered']
    #allocation3 [shape = 's32[1]{0}', space=sflag, size = 0x4, scoped, tag = 'scoped memory for tpu_custom_call.1']
    #allocation4 [shape = 's32[1]{0}', space=sflag, size = 0x4, scoped, tag = 'scoped memory for tpu_custom_call.1']
    #allocation5 [shape = 'u8[8192]{0}', space=vmem, size = 0x2000, scoped, tag = 'output window, operand 0, single buffered']
    %6 = vsyncpa [#allocation3], 0
    %7 = vsyncpa [#allocation4], 0
    // Predicated region
    $region2: #{tpu_custom_call.1} parent=1 // pred_check
      _
    $region3: #{tpu_custom_call.1} parent=1 // pred_check_branch
      %9 = sbr.rel (0) target = $region5
    $region4: #{tpu_custom_call.1} parent=1 // pred_region
      %s11 = ssub.s32 256, 256
      %12 = vsyncadd [#allocation3], %s11
      %s13 = sshll.u32 [#allocation2], 4
      %s14 = int_to_ptr.vmem [resolvable:$true] %s13
      %19 = dma.hbm_to_vmem [thread:$0]  %s0, 256, %s14, [#allocation3], 128, 128, 8
    $region5: #{tpu_custom_call.1} parent=1 // pred_fallthru
      _
    // Predicated region
    $region6: #{tpu_custom_call.1} parent=1 // pred_check
      _
    $region7: #{tpu_custom_call.1} parent=1 // pred_check_branch
      %21 = sbr.rel (0) target = $region9
    $region8: #{tpu_custom_call.1} parent=1 // pred_region
      %22 = dma.done [#allocation3], 256
    $region9: #{tpu_custom_call.1} parent=1 // pred_fallthru
      _
    %v23 = vld [vmem:[#allocation2] sm:$0xff]
    %v24 = vld [vmem:[#allocation2 + $0x8] sm:$0xff]
    %v25 = vxor.u32 %v23, 2147483648
    %v26 = vxor.u32 %v24, 2147483648
    %v27 = vmul.f32 %v25, 1.442695
    %v28 = vpow.pop %v27
    %v29 = vmul.f32 %v26, 1.442695
    %v30 = vpow.pop %v29
    %v31 = vadd.f32 %v28, 1.0
    %v32 = vadd.f32 %v30, 1.0
    %v33 = vrcp.pop %v31
    %v34 = vmul.f32 1.0, %v33
    %v35 = vrcp.pop %v32
    %v36 = vmul.f32 1.0, %v35
    %vm37 = vcmp.gt.f32.partialorder %v34, 0.5
    %vm38 = vcmp.gt.f32.partialorder %v36, 0.5
    %v39 = vsel %vm37, 1, 0
    %v40 = vsel %vm38, 1, 0
    %v41 = vcvt.s32.f32 %v39
    %v42 = vcvt.s32.f32 %v40
    %v43 = vmax.f32 %v23, 0.0
    %v44 = vmax.f32 %v24, 0.0
    %vm45 = vcmp.ne.f32.partialorder %v23, %v23
    %vm46 = vcmp.ne.f32.partialorder %v24, %v24
    %v47 = vadd.f32 %v23, 0.0
    %v48 = vadd.f32 %v24, 0.0
    %v49 = vand.u32 2147483647, %v23
    %v50 = vand.u32 2147483647, %v24
    %v51 = vsub.f32 0.0, %v49
    %v52 = vsub.f32 0.0, %v50
    %v53 = vmul.f32 %v51, 1.442695
    %v54 = vpow.pop %v53
    %v55 = vmul.f32 %v52, 1.442695
    %v56 = vpow.pop %v55
    %v57 = vadd.f32 %v54, 1.0
    %v58 = vlog2.pop %v57
    %v59 = vmul.f32 %v58, 0.6931472
    %v60 = vmul.f32 -0.5, %v54
    %v61 = vadd.f32 %v60, 1.0
    %v62 = vmul.f32 %v61, %v54
    %v63 = vand.u32 2147483647, %v54
    %vm64 = vcmp.lt.f32.partialorder %v63, 0.0004427343
    %v65 = vsel %vm64, %v62, %v59
    %v66 = vadd.f32 %v56, 1.0
    %v67 = vlog2.pop %v66
    %v68 = vmul.f32 %v67, 0.6931472
    %v69 = vmul.f32 -0.5, %v56
    %v70 = vadd.f32 %v69, 1.0
    %v71 = vmul.f32 %v70, %v56
    %v72 = vand.u32 2147483647, %v56
    %vm73 = vcmp.lt.f32.partialorder %v72, 0.0004427343
    %v74 = vsel %vm73, %v71, %v68
    %v75 = vadd.f32 %v43, %v65
    %v76 = vadd.f32 %v44, %v74
    %v77 = vsel %vm45, %v47, %v75
    %v78 = vsel %vm46, %v48, %v76
    %81 = vrot.lane.b32.xlu0 %v34, 9
    %v82 = vpop.permute.xlu0 %81
    %83 = vrot.lane.b32.xlu0 %v36, 9
    %v84 = vpop.permute.xlu0 %83
    %v87 = vmul.f32 %v77, %v82
    %v88 = vmul.f32 %v78, %v84
    %v89 = vmul.f32 %v87, %v87
    %v90 = vmul.f32 %v88, %v88
    %93 = vrot.lane.b32.xlu0 %v89, 119
    %v94 = vpop.permute.xlu0 %93
    %95 = vrot.lane.b32.xlu0 %v90, 119
    %v96 = vpop.permute.xlu0 %95
    %vm99 = vcmask 72704
    %v100 = vsel %vm99, %v94, 0.0
    %101 = vadd.xlane.f32.xlu0 %v100
    %v102 = vpop.xlane.xlu0 %101
    %v103 = vsel %vm99, %v96, 0.0
    %104 = vadd.xlane.f32.xlu0 %v103
    %v105 = vpop.xlane.xlu0 %104
    %v106 = vmax.f32 %v102, 1e-08
    %v107 = vmax.f32 %v105, 1e-08
    %v108 = vrsqrt.pop %v106
    %v109 = vrsqrt.pop %v107
    %v110 = vmul.f32 %v87, %v108
    %v111 = vmul.f32 %v88, %v109
    %v112 = vand.u32 2147483647, %v23
    %vm113 = vcmp.le.f32.partialorder %v112, 0.7853982
    %vm114 = vcmp.lt.s32.totalorder %v23, 0
    %v115 = vand.u32 %v23, 2139095040
    %v116 = vshrl.u32 %v115, 23
    %v117 = vsub.s32 %v116, 127
    %v118 = vand.u32 2147483647, %v23
    %v119 = vand.u32 %v118, 8388607
    %v120 = vor.u32 %v119, 8388608
    %v121 = vsub.s32 0, %v120
    %v122 = vadd.s32 %v117, 1
    %vm123 = vcmp.gt.s32.totalorder %v122, 0
    %v124 = vsel %vm123, %v122, 0
    %v125 = vshrl.u32 %v124, 5
    %v126 = vand.u32 %v124, 31
    %v127 = vsub.s32 32, %v126
    %v128 = vshrl.u32 683565275, %v127
    %v129 = vshll.u32 683565275, %v126
    %v130 = vshrl.u32 2475754826, %v127
    %v131 = vor.u32 %v129, %v130
    %v132 = vshll.u32 2475754826, %v126
    %v133 = vshrl.u32 2131351028, %v127
    %v134 = vor.u32 %v132, %v133
    %v135 = vshll.u32 2131351028, %v126
    %v136 = vshrl.u32 2102212464, %v127
    %v137 = vor.u32 %v135, %v136
    %v138 = vshll.u32 2102212464, %v126
    %v139 = vshrl.u32 920167782, %v127
    %v140 = vor.u32 %v138, %v139
    %v141 = vshll.u32 920167782, %v126
    %v142 = vshrl.u32 1326507024, %v127
    %v143 = vor.u32 %v141, %v142
    %vm144 = vcmp.lt.s32.totalorder %v125, 1
    %vm145 = vcmp.lt.s32.totalorder %v125, 2
    %vm146 = vcmp.lt.s32.totalorder %v125, 3
    %vm147 = vcmp.lt.s32.totalorder %v125, 4
    %v148 = vsel %vm144, %v128, %v131
    %v149 = vsel %vm147, %v137, 2102212464
    %v150 = vsel %vm146, %v134, %v149
    %v151 = vsel %vm145, %v148, %v150
    %v152 = vsel %vm144, %v131, %v134
    %v153 = vsel %vm147, %v140, 920167782
    %v154 = vsel %vm146, %v137, %v153
    %v155 = vsel %vm145, %v152, %v154
    %v156 = vsel %vm144, %v134, %v137
    %v157 = vsel %vm147, %v143, 1326507024
    %v158 = vsel %vm146, %v140, %v157
    %v159 = vsel %vm145, %v156, %v158
    %v160 = vshll.u32 %v120, 8
    %v161 = vmul.u32.u64.compose %v160, %v159
    %v162 = vextract.low.u32 %v161
    %v163 = vextract.high.u32 %v161
    %v164 = vmul.u32.u64.compose %v160, %v155
    %v165 = vextract.low.u32 %v164
    %v166 = vextract.high.u32 %v164
    %v167 = vmul.u32 %v160, %v151
    %v168 = vadd.s32 %v163, %v165
    %vm169 = vc.u32 %v163, %v165
    %v170 = vadd.s32 %v166, 1
    %v171 = vsel %vm169, %v170, %v166
    %v172 = vadd.s32 %v167, %v171
    %v173 = vadd.s32 %v172, 536870912
    %v174 = vshrl.u32 %v173, 30
    %v175 = vshll.u32 %v174, 30
    %v176 = vsub.s32 %v172, %v175
    %vm177 = vcmp.lt.s32.totalorder %v176, 0
    %v178 = vsub.s32 0, %v176
    %v179 = vsel %vm177, %v178, %v176
    %v180 = vclz %v179
    %v181 = vsub.s32 %v180, 2
    %vm182 = vcmp.gt.s32.totalorder 0, %v181
    %v183 = vsel %vm182, 0, %v181
    %v184 = vsub.s32 32, %v183
    %v185 = vshll.u32 %v176, %v183
    %v186 = vshrl.u32 %v168, %v184
    %v187 = vor.u32 %v185, %v186
    %v188 = vsub.s32 4294967266, %v183
    %v189 = vadd.s32 %v188, 127
    %v190 = vshll.u32 %v189, 23
    %v191 = vor.u32 4788187, %v190
    %v192 = vand.u32 2147483647, %v191
    %v194 = vcvt.s32.f32 %v187
    %v195 = vmul.f32 %v194, %v192
    %v196 = vxor.u32 %v195, 2147483648
    %v197 = vsel %vm114, %v196, %v195
    %v198 = vsub.s32 4, %v174
    %v199 = vsel %vm114, %v198, %v174
    %v200 = vsel %vm113, %v23, %v197
    %v201 = vsel %vm113, 0, %v199
    %v202 = vcosq.f32.pop %v200
    %v203 = vsinq.f32.pop %v200
    %vm204 = vweird.f32 %v23
    %v205 = vand.u32 %v201, 3
    %vm206 = vcmp.lt.s32.totalorder %v205, 2
    %vm207 = vcmp.eq.s32.totalorder %v205, 0
    %v208 = vxor.u32 %v203, 2147483648
    %v209 = vsel %vm207, %v202, %v208
    %vm210 = vcmp.eq.s32.totalorder %v205, 2
    %v211 = vxor.u32 %v202, 2147483648
    %v212 = vsel %vm210, %v211, %v203
    %v213 = vsel %vm206, %v209, %v212
    %v214 = vsel %vm204, nan, %v213
    %v215 = vand.u32 2147483647, %v24
    %vm216 = vcmp.le.f32.partialorder %v215, 0.7853982
    %vm217 = vcmp.lt.s32.totalorder %v24, 0
    %v218 = vand.u32 %v24, 2139095040
    %v219 = vshrl.u32 %v218, 23
    %v220 = vsub.s32 %v219, 127
    %v221 = vand.u32 2147483647, %v24
    %v222 = vand.u32 %v221, 8388607
    %v223 = vor.u32 %v222, 8388608
    %v224 = vsub.s32 0, %v223
    %v225 = vadd.s32 %v220, 1
    %vm226 = vcmp.gt.s32.totalorder %v225, 0
    %v227 = vsel %vm226, %v225, 0
    %v228 = vshrl.u32 %v227, 5
    %v229 = vand.u32 %v227, 31
    %v230 = vsub.s32 32, %v229
    %v231 = vshrl.u32 683565275, %v230
    %v232 = vshll.u32 683565275, %v229
    %v233 = vshrl.u32 2475754826, %v230
    %v234 = vor.u32 %v232, %v233
    %v235 = vshll.u32 2475754826, %v229
    %v236 = vshrl.u32 2131351028, %v230
    %v237 = vor.u32 %v235, %v236
    %v238 = vshll.u32 2131351028, %v229
    %v239 = vshrl.u32 2102212464, %v230
    %v240 = vor.u32 %v238, %v239
    %v241 = vshll.u32 2102212464, %v229
    %v242 = vshrl.u32 920167782, %v230
    %v243 = vor.u32 %v241, %v242
    %v244 = vshll.u32 920167782, %v229
    %v245 = vshrl.u32 1326507024, %v230
    %v246 = vor.u32 %v244, %v245
    %vm247 = vcmp.lt.s32.totalorder %v228, 1
    %vm248 = vcmp.lt.s32.totalorder %v228, 2
    %vm249 = vcmp.lt.s32.totalorder %v228, 3
    %vm250 = vcmp.lt.s32.totalorder %v228, 4
    %v251 = vsel %vm247, %v231, %v234
    %v252 = vsel %vm250, %v240, 2102212464
    %v253 = vsel %vm249, %v237, %v252
    %v254 = vsel %vm248, %v251, %v253
    %v255 = vsel %vm247, %v234, %v237
    %v256 = vsel %vm250, %v243, 920167782
    %v257 = vsel %vm249, %v240, %v256
    %v258 = vsel %vm248, %v255, %v257
    %v259 = vsel %vm247, %v237, %v240
    %v260 = vsel %vm250, %v246, 1326507024
    %v261 = vsel %vm249, %v243, %v260
    %v262 = vsel %vm248, %v259, %v261
    %v263 = vshll.u32 %v223, 8
    %v264 = vmul.u32.u64.compose %v263, %v262
    %v265 = vextract.low.u32 %v264
    %v266 = vextract.high.u32 %v264
    %v267 = vmul.u32.u64.compose %v263, %v258
    %v268 = vextract.low.u32 %v267
    %v269 = vextract.high.u32 %v267
    %v270 = vmul.u32 %v263, %v254
    %v271 = vadd.s32 %v266, %v268
    %vm272 = vc.u32 %v266, %v268
    %v273 = vadd.s32 %v269, 1
    %v274 = vsel %vm272, %v273, %v269
    %v275 = vadd.s32 %v270, %v274
    %v276 = vadd.s32 %v275, 536870912
    %v277 = vshrl.u32 %v276, 30
    %v278 = vshll.u32 %v277, 30
    %v279 = vsub.s32 %v275, %v278
    %vm280 = vcmp.lt.s32.totalorder %v279, 0
    %v281 = vsub.s32 0, %v279
    %v282 = vsel %vm280, %v281, %v279
    %v283 = vclz %v282
    %v284 = vsub.s32 %v283, 2
    %vm285 = vcmp.gt.s32.totalorder 0, %v284
    %v286 = vsel %vm285, 0, %v284
    %v287 = vsub.s32 32, %v286
    %v288 = vshll.u32 %v279, %v286
    %v289 = vshrl.u32 %v271, %v287
    %v290 = vor.u32 %v288, %v289
    %v291 = vsub.s32 4294967266, %v286
    %v292 = vadd.s32 %v291, 127
    %v293 = vshll.u32 %v292, 23
    %v294 = vor.u32 4788187, %v293
    %v295 = vand.u32 2147483647, %v294
    %v297 = vcvt.s32.f32 %v290
    %v298 = vmul.f32 %v297, %v295
    %v299 = vxor.u32 %v298, 2147483648
    %v300 = vsel %vm217, %v299, %v298
    %v301 = vsub.s32 4, %v277
    %v302 = vsel %vm217, %v301, %v277
    %v303 = vsel %vm216, %v24, %v300
    %v304 = vsel %vm216, 0, %v302
    %v305 = vcosq.f32.pop %v303
    %v306 = vsinq.f32.pop %v303
    %vm307 = vweird.f32 %v24
    %v308 = vand.u32 %v304, 3
    %vm309 = vcmp.lt.s32.totalorder %v308, 2
    %vm310 = vcmp.eq.s32.totalorder %v308, 0
    %v311 = vxor.u32 %v306, 2147483648
    %v312 = vsel %vm310, %v305, %v311
    %vm313 = vcmp.eq.s32.totalorder %v308, 2
    %v314 = vxor.u32 %v305, 2147483648
    %v315 = vsel %vm313, %v314, %v306
    %v316 = vsel %vm309, %v312, %v315
    %v317 = vsel %vm307, nan, %v316
    %320 = vrot.lane.b32.xlu0 %v214, 119
    %v321 = vpop.permute.xlu0 %320
    %322 = vrot.lane.b32.xlu0 %v317, 119
    %v323 = vpop.permute.xlu0 %322
    %v326 = vmul.f32 %v110, %v321
    %v327 = vmul.f32 %v111, %v323
    %v328 = vand.u32 2147483647, %v23
    %vm329 = vcmp.le.f32.partialorder %v328, 0.7853982
    %vm330 = vcmp.lt.s32.totalorder %v23, 0
    %v331 = vand.u32 %v23, 2139095040
    %v332 = vshrl.u32 %v331, 23
    %v333 = vsub.s32 %v332, 127
    %v334 = vand.u32 2147483647, %v23
    %v335 = vand.u32 %v334, 8388607
    %v336 = vor.u32 %v335, 8388608
    %v337 = vsub.s32 0, %v336
    %v338 = vadd.s32 %v333, 1
    %vm339 = vcmp.gt.s32.totalorder %v338, 0
    %v340 = vsel %vm339, %v338, 0
    %v341 = vshrl.u32 %v340, 5
    %v342 = vand.u32 %v340, 31
    %v343 = vsub.s32 32, %v342
    %v344 = vshrl.u32 683565275, %v343
    %v345 = vshll.u32 683565275, %v342
    %v346 = vshrl.u32 2475754826, %v343
    %v347 = vor.u32 %v345, %v346
    %v348 = vshll.u32 2475754826, %v342
    %v349 = vshrl.u32 2131351028, %v343
    %v350 = vor.u32 %v348, %v349
    %v351 = vshll.u32 2131351028, %v342
    %v352 = vshrl.u32 2102212464, %v343
    %v353 = vor.u32 %v351, %v352
    %v354 = vshll.u32 2102212464, %v342
    %v355 = vshrl.u32 920167782, %v343
    %v356 = vor.u32 %v354, %v355
    %v357 = vshll.u32 920167782, %v342
    %v358 = vshrl.u32 1326507024, %v343
    %v359 = vor.u32 %v357, %v358
    %vm360 = vcmp.lt.s32.totalorder %v341, 1
    %vm361 = vcmp.lt.s32.totalorder %v341, 2
    %vm362 = vcmp.lt.s32.totalorder %v341, 3
    %vm363 = vcmp.lt.s32.totalorder %v341, 4
    %v364 = vsel %vm360, %v344, %v347
    %v365 = vsel %vm363, %v353, 2102212464
    %v366 = vsel %vm362, %v350, %v365
    %v367 = vsel %vm361, %v364, %v366
    %v368 = vsel %vm360, %v347, %v350
    %v369 = vsel %vm363, %v356, 920167782
    %v370 = vsel %vm362, %v353, %v369
    %v371 = vsel %vm361, %v368, %v370
    %v372 = vsel %vm360, %v350, %v353
    %v373 = vsel %vm363, %v359, 1326507024
    %v374 = vsel %vm362, %v356, %v373
    %v375 = vsel %vm361, %v372, %v374
    %v376 = vshll.u32 %v336, 8
    %v377 = vmul.u32.u64.compose %v376, %v375
    %v378 = vextract.low.u32 %v377
    %v379 = vextract.high.u32 %v377
    %v380 = vmul.u32.u64.compose %v376, %v371
    %v381 = vextract.low.u32 %v380
    %v382 = vextract.high.u32 %v380
    %v383 = vmul.u32 %v376, %v367
    %v384 = vadd.s32 %v379, %v381
    %vm385 = vc.u32 %v379, %v381
    %v386 = vadd.s32 %v382, 1
    %v387 = vsel %vm385, %v386, %v382
    %v388 = vadd.s32 %v383, %v387
    %v389 = vadd.s32 %v388, 536870912
    %v390 = vshrl.u32 %v389, 30
    %v391 = vshll.u32 %v390, 30
    %v392 = vsub.s32 %v388, %v391
    %vm393 = vcmp.lt.s32.totalorder %v392, 0
    %v394 = vsub.s32 0, %v392
    %v395 = vsel %vm393, %v394, %v392
    %v396 = vclz %v395
    %v397 = vsub.s32 %v396, 2
    %vm398 = vcmp.gt.s32.totalorder 0, %v397
    %v399 = vsel %vm398, 0, %v397
    %v400 = vsub.s32 32, %v399
    %v401 = vshll.u32 %v392, %v399
    %v402 = vshrl.u32 %v384, %v400
    %v403 = vor.u32 %v401, %v402
    %v404 = vsub.s32 4294967266, %v399
    %v405 = vadd.s32 %v404, 127
    %v406 = vshll.u32 %v405, 23
    %v407 = vor.u32 4788187, %v406
    %v408 = vand.u32 2147483647, %v407
    %v410 = vcvt.s32.f32 %v403
    %v411 = vmul.f32 %v410, %v408
    %v412 = vxor.u32 %v411, 2147483648
    %v413 = vsel %vm330, %v412, %v411
    %v414 = vsub.s32 4, %v390
    %v415 = vsel %vm330, %v414, %v390
    %v416 = vsel %vm329, %v23, %v413
    %v417 = vsel %vm329, 0, %v415
    %v418 = vcosq.f32.pop %v416
    %v419 = vsinq.f32.pop %v416
    %vm420 = vweird.f32 %v23
    %v421 = vadd.s32 %v417, 3
    %v422 = vand.u32 %v421, 3
    %vm423 = vcmp.lt.s32.totalorder %v422, 2
    %vm424 = vcmp.eq.s32.totalorder %v422, 0
    %v425 = vxor.u32 %v419, 2147483648
    %v426 = vsel %vm424, %v418, %v425
    %vm427 = vcmp.eq.s32.totalorder %v422, 2
    %v428 = vxor.u32 %v418, 2147483648
    %v429 = vsel %vm427, %v428, %v419
    %v430 = vsel %vm423, %v426, %v429
    %v431 = vsel %vm420, nan, %v430
    %v432 = vand.u32 2147483647, %v24
    %vm433 = vcmp.le.f32.partialorder %v432, 0.7853982
    %vm434 = vcmp.lt.s32.totalorder %v24, 0
    %v435 = vand.u32 %v24, 2139095040
    %v436 = vshrl.u32 %v435, 23
    %v437 = vsub.s32 %v436, 127
    %v438 = vand.u32 2147483647, %v24
    %v439 = vand.u32 %v438, 8388607
    %v440 = vor.u32 %v439, 8388608
    %v441 = vsub.s32 0, %v440
    %v442 = vadd.s32 %v437, 1
    %vm443 = vcmp.gt.s32.totalorder %v442, 0
    %v444 = vsel %vm443, %v442, 0
    %v445 = vshrl.u32 %v444, 5
    %v446 = vand.u32 %v444, 31
    %v447 = vsub.s32 32, %v446
    %v448 = vshrl.u32 683565275, %v447
    %v449 = vshll.u32 683565275, %v446
    %v450 = vshrl.u32 2475754826, %v447
    %v451 = vor.u32 %v449, %v450
    %v452 = vshll.u32 2475754826, %v446
    %v453 = vshrl.u32 2131351028, %v447
    %v454 = vor.u32 %v452, %v453
    %v455 = vshll.u32 2131351028, %v446
    %v456 = vshrl.u32 2102212464, %v447
    %v457 = vor.u32 %v455, %v456
    %v458 = vshll.u32 2102212464, %v446
    %v459 = vshrl.u32 920167782, %v447
    %v460 = vor.u32 %v458, %v459
    %v461 = vshll.u32 920167782, %v446
    %v462 = vshrl.u32 1326507024, %v447
    %v463 = vor.u32 %v461, %v462
    %vm464 = vcmp.lt.s32.totalorder %v445, 1
    %vm465 = vcmp.lt.s32.totalorder %v445, 2
    %vm466 = vcmp.lt.s32.totalorder %v445, 3
    %vm467 = vcmp.lt.s32.totalorder %v445, 4
    %v468 = vsel %vm464, %v448, %v451
    %v469 = vsel %vm467, %v457, 2102212464
    %v470 = vsel %vm466, %v454, %v469
    %v471 = vsel %vm465, %v468, %v470
    %v472 = vsel %vm464, %v451, %v454
    %v473 = vsel %vm467, %v460, 920167782
    %v474 = vsel %vm466, %v457, %v473
    %v475 = vsel %vm465, %v472, %v474
    %v476 = vsel %vm464, %v454, %v457
    %v477 = vsel %vm467, %v463, 1326507024
    %v478 = vsel %vm466, %v460, %v477
    %v479 = vsel %vm465, %v476, %v478
    %v480 = vshll.u32 %v440, 8
    %v481 = vmul.u32.u64.compose %v480, %v479
    %v482 = vextract.low.u32 %v481
    %v483 = vextract.high.u32 %v481
    %v484 = vmul.u32.u64.compose %v480, %v475
    %v485 = vextract.low.u32 %v484
    %v486 = vextract.high.u32 %v484
    %v487 = vmul.u32 %v480, %v471
    %v488 = vadd.s32 %v483, %v485
    %vm489 = vc.u32 %v483, %v485
    %v490 = vadd.s32 %v486, 1
    %v491 = vsel %vm489, %v490, %v486
    %v492 = vadd.s32 %v487, %v491
    %v493 = vadd.s32 %v492, 536870912
    %v494 = vshrl.u32 %v493, 30
    %v495 = vshll.u32 %v494, 30
    %v496 = vsub.s32 %v492, %v495
    %vm497 = vcmp.lt.s32.totalorder %v496, 0
    %v498 = vsub.s32 0, %v496
    %v499 = vsel %vm497, %v498, %v496
    %v500 = vclz %v499
    %v501 = vsub.s32 %v500, 2
    %vm502 = vcmp.gt.s32.totalorder 0, %v501
    %v503 = vsel %vm502, 0, %v501
    %v504 = vsub.s32 32, %v503
    %v505 = vshll.u32 %v496, %v503
    %v506 = vshrl.u32 %v488, %v504
    %v507 = vor.u32 %v505, %v506
    %v508 = vsub.s32 4294967266, %v503
    %v509 = vadd.s32 %v508, 127
    %v510 = vshll.u32 %v509, 23
    %v511 = vor.u32 4788187, %v510
    %v512 = vand.u32 2147483647, %v511
    %v514 = vcvt.s32.f32 %v507
    %v515 = vmul.f32 %v514, %v512
    %v516 = vxor.u32 %v515, 2147483648
    %v517 = vsel %vm434, %v516, %v515
    %v518 = vsub.s32 4, %v494
    %v519 = vsel %vm434, %v518, %v494
    %v520 = vsel %vm433, %v24, %v517
    %v521 = vsel %vm433, 0, %v519
    %v522 = vcosq.f32.pop %v520
    %v523 = vsinq.f32.pop %v520
    %vm524 = vweird.f32 %v24
    %v525 = vadd.s32 %v521, 3
    %v526 = vand.u32 %v525, 3
    %vm527 = vcmp.lt.s32.totalorder %v526, 2
    %vm528 = vcmp.eq.s32.totalorder %v526, 0
    %v529 = vxor.u32 %v523, 2147483648
    %v530 = vsel %vm528, %v522, %v529
    %vm531 = vcmp.eq.s32.totalorder %v526, 2
    %v532 = vxor.u32 %v522, 2147483648
    %v533 = vsel %vm531, %v532, %v523
    %v534 = vsel %vm527, %v530, %v533
    %v535 = vsel %vm524, nan, %v534
    %538 = vrot.lane.b32.xlu0 %v431, 119
    %v539 = vpop.permute.xlu0 %538
    %540 = vrot.lane.b32.xlu0 %v535, 119
    %v541 = vpop.permute.xlu0 %540
    %v544 = vmul.f32 %v110, %v539
    %v545 = vmul.f32 %v111, %v541
    %v546 = vmul.f32 %v23, 0.7957747
    %v547 = vmul.f32 %v24, 0.7957747
    %550 = vrot.lane.b32.xlu0 %v326, 119
    %v551 = vpop.permute.xlu0 %550
    %552 = vrot.lane.b32.xlu0 %v327, 119
    %v553 = vpop.permute.xlu0 %552
    %558 = vrot.lane.b32.xlu0 %v546, 119
    %v559 = vpop.permute.xlu0 %558
    %560 = vrot.lane.b32.xlu0 %v547, 119
    %v561 = vpop.permute.xlu0 %560
    %564 = vrot.lane.b32.xlu0 %v34, 36
    %v565 = vpop.permute.xlu0 %564
    %566 = vrot.lane.b32.xlu0 %v36, 36
    %v567 = vpop.permute.xlu0 %566
    %572 = vrot.lane.b32.xlu0 %v41, 45
    %v573 = vpop.permute.xlu0 %572
    %574 = vrot.lane.b32.xlu0 %v42, 45
    %v575 = vpop.permute.xlu0 %574
    %v578 = vsel %vm99, %v551, %v544
    %v579 = vsel %vm99, %v553, %v545
    %vm580 = vcmask 146432
    %v581 = vsel %vm580, %v578, %v559
    %v582 = vsel %vm580, %v579, %v561
    %vm583 = vcmask 220160
    %v584 = vsel %vm583, %v581, %v559
    %v585 = vsel %vm583, %v582, %v561
    %vm586 = vcmask 293888
    %v587 = vsel %vm586, %v584, %v565
    %v588 = vsel %vm586, %v585, %v567
    %vm589 = vcmask 367616
    %v590 = vsel %vm589, %v587, %v573
    %v591 = vsel %vm589, %v588, %v575
    %vm592 = vcmask 441344
    %593 = vst.msk [vmem:[#allocation5] sm:$0xff] %vm592, %v590
    %594 = vst.msk [vmem:[#allocation5 + $0x8] sm:$0xff] %vm592, %v591
    // Predicated region
    $region10: #{tpu_custom_call.1} parent=1 // pred_check
      _
    $region11: #{tpu_custom_call.1} parent=1 // pred_check_branch
      %596 = sbr.rel (0) target = $region13
    $region12: #{tpu_custom_call.1} parent=1 // pred_region
      %s598 = ssub.s32 256, 256
      %599 = vsyncadd [#allocation4], %s598
      %s600 = sshll.u32 [#allocation5], 4
      %s601 = int_to_ptr.vmem [resolvable:$true] %s600
      %606 = dma.vmem_to_hbm [thread:$0]  %s601, 256, %s1, [#allocation4], 128, 128, 8
    $region13: #{tpu_custom_call.1} parent=1 // pred_fallthru
      _
    // Predicated region
    $region14: #{tpu_custom_call.1} parent=1 // pred_check
      _
    $region15: #{tpu_custom_call.1} parent=1 // pred_check_branch
      %608 = sbr.rel (0) target = $region17
    $region16: #{tpu_custom_call.1} parent=1 // pred_region
      %609 = dma.done [#allocation4], 256
    $region17: #{tpu_custom_call.1} parent=1 // pred_fallthru
      _
    %610 = vsyncpa [#allocation3], 1
    %611 = vsyncpa [#allocation4], 1

</llo_original>
